<compile_context>
chip_gen: v7x
topology: tpu7x:2x2x1
jax: 0.10.0
libtpu: 0.0.40
codegen_flags: <defaults>
</compile_context>

<pallas_src>
import math

import jax
import jax.numpy as jnp
from jax.experimental import pallas as pl
from jax.experimental.pallas import tpu as pltpu


def _layer_scale_kernel(x_ref, gamma_ref, beta_ref, out_ref):
    # x block: (tm, Cw); gamma/beta blocks: (1, Cw) f32, broadcast over rows.
    x = x_ref[...].astype(jnp.float32)
    out_ref[...] = (x * gamma_ref[...] + beta_ref[...]).astype(out_ref.dtype)


def _choose_tm(m_rows, row_bytes, itemsize, vmem_budget_bytes, max_block_rows):
    """Pick the block row count for a (m_rows, Cw) array."""
    # Packed sublane multiple: 8 for 4-byte, 16 for 2-byte, 32 for 1-byte dtypes.
    sublane_mult = max(8, 32 // max(itemsize, 1))
    # Live VMEM set ~= double-buffered input + double-buffered output.
    tm = max(1, vmem_budget_bytes // (4 * row_bytes))
    if max_block_rows is not None:
        tm = min(tm, max_block_rows)
    # Prefer >= 2 grid steps so the 'parallel' axis can shard across v7x's 2 TCs.
    if tm >= m_rows and m_rows > sublane_mult:
        tm = pl.cdiv(m_rows, 2)
    if tm >= m_rows:
        # Tiny input: one full-extent block (always a legal block shape).
        return m_rows
    tm = max(sublane_mult, (tm // sublane_mult) * sublane_mult)
    return min(tm, m_rows)


def layer_scale_forward(x, gamma, beta, *,
                        vmem_budget_bytes=8 * 1024 * 1024,
                        max_block_rows=None):
    """LayerScale forward: gamma * x + beta over the last dim.

    x:     (..., C)  any floating dtype
    gamma: (C,) float
    beta:  (C,) float
    """
    orig_shape = x.shape
    C = int(orig_shape[-1])
    M = int(math.prod(orig_shape[:-1])) if len(orig_shape) > 1 else 1

    dtype = x.dtype
    itemsize = jnp.dtype(dtype).itemsize

    g = gamma.astype(jnp.float32)
    b = beta.astype(jnp.float32)

    # ---- Lane densification: fold k rows into the lane axis when C is not
    # lane-dense. Contiguous reshape => free; no padding path.
    k = 1
    if C % 128 != 0:
        k = 128 // math.gcd(C, 128)
        if M % k != 0:
            k = 1  # cannot densify without padding -> keep full-extent last dim
    Cw = C * k
    Mw = M // k

    x2 = x.reshape(Mw, Cw)
    if k > 1:
        g2 = jnp.tile(g, (k,)).reshape(1, Cw)
        b2 = jnp.tile(b, (k,)).reshape(1, Cw)
    else:
        g2 = g.reshape(1, Cw)
        b2 = b.reshape(1, Cw)

    row_bytes = Cw * itemsize
    tm = _choose_tm(Mw, row_bytes, itemsize, vmem_budget_bytes, max_block_rows)
    n_blocks = pl.cdiv(Mw, tm)  # ragged last block handled by Pallas (masked)

    out = pl.pallas_call(
        _layer_scale_kernel,
        out_shape=jax.ShapeDtypeStruct((Mw, Cw), dtype),
        grid=(n_blocks,),
        in_specs=[
            pl.BlockSpec((tm, Cw), lambda i: (i, 0)),   # x rows, pipelined
            pl.BlockSpec((1, Cw), lambda i: (0, 0)),    # gamma, VMEM-resident
            pl.BlockSpec((1, Cw), lambda i: (0, 0)),    # beta, VMEM-resident
        ],
        out_specs=pl.BlockSpec((tm, Cw), lambda i: (i, 0)),
        compiler_params=pltpu.CompilerParams(
            dimension_semantics=("parallel",),
            # Safe on all generations (<= physical VMEM on v5e/v6e/v7x) and
            # comfortably above the ~8 MiB double-buffered live set.
            vmem_limit_bytes=32 * 1024 * 1024,
        ),
    )(x2, g2, b2)

    return out.reshape(orig_shape)


def layer_scale_reference(x, gamma, beta):
    """Pure-JAX reference mirroring the PyTorch forward (f32 math)."""
    y = gamma.astype(jnp.float32) * x.astype(jnp.float32) + beta.astype(jnp.float32)
    return y.astype(x.dtype)


if __name__ == "__main__":
    key = jax.random.PRNGKey(0)
    k_x, k_g, k_b, k_x2, k_x3 = jax.random.split(key, 5)

    # --- Case 1: module-consistent token shape (B, N, C), lane-densified path.
    B, N, C = 2, 8, 32
    x = jax.random.normal(k_x, (B, N, C), dtype=jnp.float32)
    gamma = 1.0 + 0.1 * jax.random.normal(k_g, (C,), dtype=jnp.float32)
    beta = 0.1 * jax.random.normal(k_b, (C,), dtype=jnp.float32)

    out = jax.block_until_ready(layer_scale_forward(x, gamma, beta))
    ref = layer_scale_reference(x, gamma, beta)
    assert out.shape == x.shape and out.dtype == x.dtype
    assert jnp.allclose(out, ref, atol=1e-6, rtol=1e-6)

    # --- Case 2: non-densifiable fallback + ragged last block + multi-step grid.
    B2, N2, C2 = 2, 33, 96           # M = 66, 66 % 4 != 0 -> k falls back to 1
    x_b = jax.random.normal(k_x2, (B2, N2, C2), dtype=jnp.float32)
    gamma_b = 1.0 + 0.1 * jax.random.normal(k_g, (C2,), dtype=jnp.float32)
    beta_b = 0.1 * jax.random.normal(k_b, (C2,), dtype=jnp.float32)

    out_b = jax.block_until_ready(
        layer_scale_forward(x_b, gamma_b, beta_b, max_block_rows=16))
    ref_b = layer_scale_reference(x_b, gamma_b, beta_b)
    assert out_b.shape == x_b.shape
    assert jnp.allclose(out_b, ref_b, atol=1e-6, rtol=1e-6)

    # --- Case 3: bf16 input (f32 math inside the kernel, bf16 output).
    x_c = jax.random.normal(k_x3, (2, 16, 32), dtype=jnp.bfloat16)
    out_c = jax.block_until_ready(layer_scale_forward(x_c, gamma, beta))
    ref_c = layer_scale_reference(x_c, gamma, beta)
    assert out_c.dtype == jnp.bfloat16
    assert jnp.allclose(out_c.astype(jnp.float32), ref_c.astype(jnp.float32),
                        atol=2e-2, rtol=2e-2)

    print("KERNEL_OK")
</pallas_src>

<mosaic_0001>
module attributes {stable_mosaic.version = 11 : i64} {
  func.func @_layer_scale_kernel(%arg0: i32, %arg1: memref<4x128xf32, #tpu.memory_space<vmem>>, %arg2: memref<1x128xf32, #tpu.memory_space<vmem>>, %arg3: memref<1x128xf32, #tpu.memory_space<vmem>>, %arg4: memref<4x128xf32, #tpu.memory_space<vmem>>) attributes {dimension_semantics = [#tpu.dimension_semantics<parallel>], iteration_bounds = array<i64: 1>, scalar_prefetch = 0 : i64, scratch_operands = 0 : i64, tpu.core_type = #tpu.core_type<tc>, window_params = [{transform_indices = @transform_0, window_bounds = array<i64: 4, 128>}, {pipeline_mode = #tpu.pipeline_mode<synchronous>, transform_indices = @transform_1, window_bounds = array<i64: 1, 128>}, {pipeline_mode = #tpu.pipeline_mode<synchronous>, transform_indices = @transform_2, window_bounds = array<i64: 1, 128>}, {transform_indices = @transform_3, window_bounds = array<i64: 4, 128>}]} {
    %c0 = arith.constant 0 : index
    %c0_0 = arith.constant 0 : index
    %0 = vector.load %arg1[%c0, %c0_0] : memref<4x128xf32, #tpu.memory_space<vmem>>, vector<4x128xf32>
    %c0_1 = arith.constant 0 : index
    %c0_2 = arith.constant 0 : index
    %1 = vector.load %arg2[%c0_1, %c0_2] : memref<1x128xf32, #tpu.memory_space<vmem>>, vector<1x128xf32>
    %2 = vector.broadcast %1 : vector<1x128xf32> to vector<4x128xf32>
    %3 = arith.mulf %0, %2 : vector<4x128xf32>
    %c0_3 = arith.constant 0 : index
    %c0_4 = arith.constant 0 : index
    %4 = vector.load %arg3[%c0_3, %c0_4] : memref<1x128xf32, #tpu.memory_space<vmem>>, vector<1x128xf32>
    %5 = vector.broadcast %4 : vector<1x128xf32> to vector<4x128xf32>
    %6 = arith.addf %3, %5 : vector<4x128xf32>
    %c0_5 = arith.constant 0 : index
    %c0_6 = arith.constant 0 : index
    %7 = vector.load %arg4[%c0_5, %c0_6] : memref<4x128xf32, #tpu.memory_space<vmem>>, vector<4x128xf32>
    tpu.vector_store %arg4[%c0_5, %c0_6], %6 {strides = array<i32>} : memref<4x128xf32, #tpu.memory_space<vmem>>, vector<4x128xf32>,
    return
  }
  func.func @transform_0(%arg0: i32) -> (i32, i32) {
    %c0_i32 = arith.constant 0 : i32
    %c0_i32_0 = arith.constant 0 : i32
    return %arg0, %c0_i32 : i32, i32
  }
  func.func @transform_1(%arg0: i32) -> (i32, i32) {
    %c0_i32 = arith.constant 0 : i32
    %c0_i32_0 = arith.constant 0 : i32
    %c0_i32_1 = arith.constant 0 : i32
    return %c0_i32, %c0_i32_0 : i32, i32
  }
  func.func @transform_2(%arg0: i32) -> (i32, i32) {
    %c0_i32 = arith.constant 0 : i32
    %c0_i32_0 = arith.constant 0 : i32
    %c0_i32_1 = arith.constant 0 : i32
    return %c0_i32, %c0_i32_0 : i32, i32
  }
  func.func @transform_3(%arg0: i32) -> (i32, i32) {
    %c0_i32 = arith.constant 0 : i32
    %c0_i32_0 = arith.constant 0 : i32
    return %arg0, %c0_i32 : i32, i32
  }
}

</mosaic_0001>

<llo_original>
// kernel: tpu_custom_call.1
$region0: #{tpu_custom_call.1}
  #allocation0 [shape = 'u32[]', space=smem, size = 0x4, offset = 0x4, fixed_abs, tag = 'smem constant byte address 0x4 - core index']
  #allocation1 [shape = 'u32[144,128]{1,0:T(1,128)}', space=vmem, size = 0x12000, scoped, tag = 'internal scratch']
  %s0 = inlined_call_operand.hbm [shape: f32[4,128], index: 0, kind: input, shape index: {}]
  %s1 = inlined_call_operand.vmem [shape: f32[1,128], index: 1, kind: input, shape index: {}]
  %s2 = inlined_call_operand.vmem [shape: f32[1,128], index: 2, kind: input, shape index: {}]
  %s3 = inlined_call_operand.hbm [shape: f32[4,128], index: 3, kind: output, shape index: {}]
  %s4 = sld [smem:[#allocation0]]
  $region26: #{tpu_custom_call.1} parent=0
    _
  %s6 = ssub.s32 1, %s4
  %s7 = scalar_select 0, %s6, %s4
  $region1: #{tpu_custom_call.1} parent=0
    #allocation2 [shape = 'u8[2048]{0}', space=vmem, size = 0x800, scoped, tag = 'input window, operand 0, single buffered']
    #allocation3 [shape = 's32[1]{0}', space=sflag, size = 0x4, scoped, tag = 'scoped memory for tpu_custom_call.1']
    #allocation4 [shape = 's32[1]{0}', space=sflag, size = 0x4, scoped, tag = 'scoped memory for tpu_custom_call.1']
    #allocation5 [shape = 'u8[2048]{0}', space=vmem, size = 0x800, scoped, tag = 'output window, operand 0, single buffered']
    %8 = vsyncpa [#allocation3], 0
    %9 = vsyncpa [#allocation4], 0
    // Predicated region
    $region2: #{tpu_custom_call.1} parent=1 // pred_check
      _
    $region3: #{tpu_custom_call.1} parent=1 // pred_check_branch
      %11 = sbr.rel (0) target = $region5
    $region4: #{tpu_custom_call.1} parent=1 // pred_region
      %s13 = ssub.s32 64, 64
      %14 = vsyncadd [#allocation3], %s13
      %s16 = sshll.u32 [#allocation2], 4
      %s17 = int_to_ptr.vmem [resolvable:$true] %s16
      %19 = dma.hbm_to_vmem [thread:$0]  %s0, 64, %s17, [#allocation3]
    $region5: #{tpu_custom_call.1} parent=1 // pred_fallthru
      _
    // Predicated region
    $region6: #{tpu_custom_call.1} parent=1 // pred_check
      _
    $region7: #{tpu_custom_call.1} parent=1 // pred_check_branch
      %21 = sbr.rel (0) target = $region9
    $region8: #{tpu_custom_call.1} parent=1 // pred_region
      _
    $region9: #{tpu_custom_call.1} parent=1 // pred_fallthru
      _
    // Predicated region
    $region10: #{tpu_custom_call.1} parent=1 // pred_check
      _
    $region11: #{tpu_custom_call.1} parent=1 // pred_check_branch
      %23 = sbr.rel (0) target = $region13
    $region12: #{tpu_custom_call.1} parent=1 // pred_region
      _
    $region13: #{tpu_custom_call.1} parent=1 // pred_fallthru
      _
    // Predicated region
    $region14: #{tpu_custom_call.1} parent=1 // pred_check
      _
    $region15: #{tpu_custom_call.1} parent=1 // pred_check_branch
      %25 = sbr.rel (0) target = $region17
    $region16: #{tpu_custom_call.1} parent=1 // pred_region
      %26 = dma.done [#allocation3], 64
    $region17: #{tpu_custom_call.1} parent=1 // pred_fallthru
      _
    %v27 = vld [vmem:[#allocation2] sm:$0xf]
    %v28 = vld [vmem:[%s1] sm:$0x1]
    %v30 = vlaneseq
    %v31 = vshrl.u32 %v30, 7
    %v32 = vsub.s32 0, %v31
    %v33 = vrot.slane %v28, %v32
    %v35 = vmul.f32 %v27, %v33
    %v36 = vld [vmem:[%s2] sm:$0x1]
    %v38 = vlaneseq
    %v39 = vshrl.u32 %v38, 7
    %v40 = vsub.s32 0, %v39
    %v41 = vrot.slane %v36, %v40
    %v43 = vadd.f32 %v35, %v41
    %44 = vst [vmem:[#allocation5] sm:$0xf] %v43
    // Predicated region
    $region18: #{tpu_custom_call.1} parent=1 // pred_check
      _
    $region19: #{tpu_custom_call.1} parent=1 // pred_check_branch
      %46 = sbr.rel (0) target = $region21
    $region20: #{tpu_custom_call.1} parent=1 // pred_region
      %s48 = ssub.s32 64, 64
      %49 = vsyncadd [#allocation4], %s48
      %s51 = sshll.u32 [#allocation5], 4
      %s52 = int_to_ptr.vmem [resolvable:$true] %s51
      %54 = dma.vmem_to_hbm [thread:$0]  %s52, 64, %s3, [#allocation4]
    $region21: #{tpu_custom_call.1} parent=1 // pred_fallthru
      _
    // Predicated region
    $region22: #{tpu_custom_call.1} parent=1 // pred_check
      _
    $region23: #{tpu_custom_call.1} parent=1 // pred_check_branch
      %56 = sbr.rel (0) target = $region25
    $region24: #{tpu_custom_call.1} parent=1 // pred_region
      %57 = dma.done [#allocation4], 64
    $region25: #{tpu_custom_call.1} parent=1 // pred_fallthru
      _
    %58 = vsyncpa [#allocation3], 1
    %59 = vsyncpa [#allocation4], 1

</llo_original>
